<compile_context>
chip_gen: v6e
topology: v6e:2x2x1
jax: 0.10.0
libtpu: 0.0.40
codegen_flags: <defaults>
</compile_context>

<pallas_src>
import functools

import jax
import jax.numpy as jnp
import numpy as np
from jax import lax
from jax.experimental import pallas as pl
from jax.experimental.pallas import tpu as pltpu

KSIZE = 3      # Conv2d kernel_size (module default)
POOL_K = 3     # MaxPool2d(kernel_size=3, stride=2) (module default pooling='max')
POOL_S = 2
BN_EPS = 1e-5

_TARGET_M_ROWS = 256        # MXU M target (256-wide on v6e/v7x; >=128 also covers v5e)
_MIN_M_ROWS_PER_STEP = 128  # don't split the batch below this just to feed v7x's 2nd TC


def _hybrid_block_kernel(x_ref, w_ref, b_ref, out_ref, scr_ref, *,
                         img_rows, cout, n_even, woc, woc_pad):
    """One batch block: 3x3 valid conv (BN scale folded) -> maxpool 3x3/2 -> +bias -> ReLU.

    x_ref  : (B*H, W*Cin)          compute dtype (bf16 default / f32)
    w_ref  : (W*Cin, 3*woc_pad)    compute dtype; block-Toeplitz conv weights with BN scale
                                   folded in; the 3 kh blocks are concatenated along columns
                                   (each padded to woc_pad, a multiple of 128); within each
                                   block the output columns are permuted into
                                   [even-ow | odd-ow] Cout-wide groups.
    b_ref  : (1, Pw*Cout) f32      folded BN bias, tiled per pooled column
    out_ref: (B, Po, Pw*Cout) f32
    scr_ref: (B*H-4, Pw*Cout) f32  VMEM scratch for the stride-2 pool-row selection
    """
    BH = x_ref.shape[0]
    B, Po, PwC = out_ref.shape

    # ---- conv: ONE wide MXU matmul (f32 accumulation), kh folded via three row-shifted
    #      column-block adds (vreg-aligned lane slices; sublane shifts hit XLU slack) ----
    y = jnp.dot(x_ref[...], w_ref[...], preferred_element_type=jnp.float32)  # (BH, 3*woc_pad)
    acc = (y[0:BH - 2, 0:woc]
           + y[1:BH - 1, woc_pad:woc_pad + woc]
           + y[2:BH, 2 * woc_pad:2 * woc_pad + woc])                         # (BH-2, Wo*Cout)

    # ---- MaxPool2d(3, stride=2), fully vectorized ----
    # vertical max over 3 consecutive conv rows (rows past Ho-1 inside an image are garbage /
    # cross-image but are never selected by the per-image stride-2 row pick below)
    v = jnp.maximum(jnp.maximum(acc[0:BH - 4, :], acc[1:BH - 3, :]), acc[2:BH - 2, :])
    # horizontal max: columns are [even ow | odd ow] Cout-wide blocks, so the three window
    # taps {2q, 2q+1, 2q+2} are three contiguous lane slices.
    v_e0 = v[:, 0:PwC]                                   # ow = 2q
    v_e1 = v[:, cout:cout + PwC]                         # ow = 2q + 2
    v_o0 = v[:, n_even * cout:n_even * cout + PwC]       # ow = 2q + 1
    scr_ref[...] = jnp.maximum(jnp.maximum(v_e0, v_e1), v_o0)   # (BH-4, Pw*Cout)

    # ---- stride-2 pool-row selection per image, then bias + ReLU on Po rows only ----
    for b in range(B):   # static unroll (B is small)
        rows = scr_ref[pl.ds(b * img_rows, Po, stride=POOL_S), :]
        out_ref[b] = jnp.maximum(rows + b_ref[...], 0.0)


def hybrid_net_block_nhwc(x_nhwc, conv_w_oihw, bn_gamma, bn_beta, bn_mean, bn_var,
                          *, compute_dtype=jnp.bfloat16):
    """NHWC-native fused forward: Conv3x3 valid (no bias) -> BN(eval) -> ReLU -> MaxPool3x3/2.

    x_nhwc: (N, H, W, Cin). Returns (N, Po, Pw, Cout) f32.
    Calling this entry point directly avoids the two standalone HBM transposes the NCHW
    wrapper needs (they can dominate wall time for this memory-light fused op).
    """
    N, H, W, Cin = x_nhwc.shape
    Cout, Cin_w, Kh, Kw = conv_w_oihw.shape
    assert Cin_w == Cin and (Kh, Kw) == (KSIZE, KSIZE)
    Ho, Wo = H - KSIZE + 1, W - KSIZE + 1
    Po = (Ho - POOL_K) // POOL_S + 1
    Pw = (Wo - POOL_K) // POOL_S + 1
    assert Po >= 1 and Pw >= 1
    n_even = (Wo + 1) // 2              # number of even-ow column blocks (== Pw + 1)
    WoC = Wo * Cout
    woc_pad = ((WoC + 127) // 128) * 128
    PwC = Pw * Cout
    WC = W * Cin

    # ---- batch blocking: M = B*H rows per MXU dot ----
    B = min(N, max(1, _TARGET_M_ROWS // H))
    # keep both of v7x's TensorCores busy when that doesn't starve the MXU's M dimension
    if B == N and N > 1 and ((N + 1) // 2) * H >= _MIN_M_ROWS_PER_STEP:
        B = (N + 1) // 2
    if (B * H) % 8 != 0:                # x block leading dim must be sublane-divisible ...
        B = N                           # ... or equal the full array dim (single block)
    num_blocks = (N + B - 1) // B
    N_pad = num_blocks * B

    # ---- host-side parameter folding (BN eval-mode running stats) ----
    inv_std = 1.0 / jnp.sqrt(bn_var.astype(jnp.float32) + BN_EPS)
    scale = bn_gamma.astype(jnp.float32) * inv_std                         # (Cout,)
    bias = bn_beta.astype(jnp.float32) - bn_mean.astype(jnp.float32) * scale

    # Block-Toeplitz conv weights with BN scale folded in.  The 3 kh blocks are concatenated
    # along output columns (each padded to woc_pad so in-kernel lane slices stay aligned);
    # output columns within a block are permuted into [even ow | odd ow] Cout-wide groups so
    # the in-kernel pool is pure lane slices.
    w_hwio = jnp.transpose(conv_w_oihw, (2, 3, 1, 0)).astype(jnp.float32)  # (K,K,Cin,Cout)
    w_scaled = w_hwio * scale[None, None, None, :]
    ow_order = np.concatenate([np.arange(0, Wo, 2), np.arange(1, Wo, 2)])  # (Wo,)
    sel = np.zeros((KSIZE, Wo, W), np.float32)     # sel[kw, g, j] = 1 iff j == ow_order[g]+kw
    for kw in range(KSIZE):
        sel[kw, np.arange(Wo), ow_order + kw] = 1.0
    wmat = jnp.einsum('kgj,hkco->jchgo', jnp.asarray(sel), w_scaled)       # (W,Cin,K,Wo,Cout)
    wmat = wmat.reshape(WC, KSIZE, WoC)
    wmat = jnp.pad(wmat, ((0, 0), (0, 0), (0, woc_pad - WoC)))
    wmat = wmat.reshape(WC, KSIZE * woc_pad).astype(compute_dtype)

    bias_cols = jnp.tile(bias, Pw).reshape(1, PwC).astype(jnp.float32)

    # input as (N_pad*H, W*Cin): lane-dense, contiguous per-image row blocks (no relayout)
    x_rows = x_nhwc.reshape(N, H, WC).astype(compute_dtype).reshape(N * H, WC)
    if N_pad != N:
        x_rows = jnp.pad(x_rows, ((0, (N_pad - N) * H), (0, 0)))

    kernel = functools.partial(_hybrid_block_kernel, img_rows=H, cout=Cout,
                               n_even=n_even, woc=WoC, woc_pad=woc_pad)

    def _call(single_buffer_consts):
        # weight/bias index_maps are constant across the grid -> single-buffer them in VMEM
        const_kw = dict(pipeline_mode=pl.Buffered(1)) if single_buffer_consts else {}
        grid_spec = pltpu.PrefetchScalarGridSpec(
            num_scalar_prefetch=0,
            grid=(num_blocks,),
            in_specs=[
                pl.BlockSpec((B * H, WC), lambda n: (n, 0)),
                pl.BlockSpec((WC, KSIZE * woc_pad), lambda n: (0, 0), **const_kw),
                pl.BlockSpec((1, PwC), lambda n: (0, 0), **const_kw),
            ],
            out_specs=pl.BlockSpec((B, Po, PwC), lambda n: (n, 0, 0)),
            scratch_shapes=[pltpu.VMEM((B * H - 4, PwC), jnp.float32)],
        )
        return pl.pallas_call(
            kernel,
            out_shape=jax.ShapeDtypeStruct((N_pad, Po, PwC), jnp.float32),
            grid_spec=grid_spec,
            compiler_params=pltpu.CompilerParams(dimension_semantics=("parallel",)),
        )(x_rows, wmat, bias_cols)

    try:
        out = _call(True)
    except Exception:        # pragma: no cover — jax without BlockSpec pipeline_mode support
        out = _call(False)

    # TODO(synk): for production H/W/Cout, tile over pool-output column (Wo) blocks with a
    #             banded Toeplitz weight tile (the full matrix is only K/W dense) plus a
    #             second "parallel" grid axis over pool-row blocks — needed to stay under
    #             v7x's 64 MiB VMEM and to keep both TensorCores busy at N == 1.
    # TODO(synk): Pw*Cout = 48 (< 128) here -> masked vst partial stores; for production Cout
    #             keep Pw*Cout a multiple of 128 (or pad/flatten the pooled columns) so the
    #             writeback is lane-dense.
    return out[:N].reshape(N, Po, Pw, Cout)


def hybrid_net_block(x_nchw, conv_w_oihw, bn_gamma, bn_beta, bn_mean, bn_var,
                     *, compute_dtype=jnp.bfloat16):
    """Forward pass of HybridNetBlock with module defaults
    (Conv2d k=3/s=1/p=0/bias=False, BatchNorm2d (eval), ReLU, MaxPool2d(3,2), firstmost=False).

    x_nchw: (N, Cin, H, W) f32. Returns (N, Cout, Po, Pw) f32 (NCHW).
    compute_dtype: matmul-input dtype (bfloat16 default on all TPU generations);
                   accumulation and the pool/bias/ReLU epilogue stay f32.
    """
    # Layout glue only — NHWC-native callers should call hybrid_net_block_nhwc directly and
    # skip both standalone HBM transposes.
    x_nhwc = jnp.transpose(x_nchw, (0, 2, 3, 1))
    out_nhwc = hybrid_net_block_nhwc(x_nhwc, conv_w_oihw, bn_gamma, bn_beta, bn_mean, bn_var,
                                     compute_dtype=compute_dtype)
    return jnp.transpose(out_nhwc, (0, 3, 1, 2))


def _reference_forward(x_nchw, conv_w_oihw, bn_gamma, bn_beta, bn_mean, bn_var):
    """Pure-JAX reference of the same forward pass (for correctness check)."""
    y = lax.conv_general_dilated(
        x_nchw, conv_w_oihw, window_strides=(1, 1), padding="VALID",
        dimension_numbers=("NCHW", "OIHW", "NCHW"),
        precision=lax.Precision.HIGHEST)
    scale = bn_gamma / jnp.sqrt(bn_var + BN_EPS)
    bias = bn_beta - bn_mean * scale
    y = y * scale[None, :, None, None] + bias[None, :, None, None]
    y = jnp.maximum(y, 0.0)
    y = lax.reduce_window(y, -jnp.inf, lax.max,
                          (1, 1, POOL_K, POOL_K), (1, 1, POOL_S, POOL_S), "VALID")
    return y


if __name__ == "__main__":
    key = jax.random.PRNGKey(0)
    k_x, k_w, k_g, k_b, k_m, k_v = jax.random.split(key, 6)

    N, Cin, Cout, H, W = 2, 4, 8, 16, 16
    x = jax.random.normal(k_x, (N, Cin, H, W), jnp.float32)

    # Conv2d(4, 8, kernel_size=3, stride=1, padding=0, bias=False)
    fan_in = Cin * KSIZE * KSIZE
    bound = 1.0 / np.sqrt(fan_in)
    conv_w = jax.random.uniform(k_w, (Cout, Cin, KSIZE, KSIZE), jnp.float32, -bound, bound)

    # BatchNorm2d(8) affine params + running stats (deterministic synthetic init)
    bn_gamma = 1.0 + 0.1 * jax.random.normal(k_g, (Cout,), jnp.float32)
    bn_beta = 0.1 * jax.random.normal(k_b, (Cout,), jnp.float32)
    bn_mean = 0.05 * jax.random.normal(k_m, (Cout,), jnp.float32)
    bn_var = 1.0 + 0.1 * jax.random.uniform(k_v, (Cout,), jnp.float32)

    ref = _reference_forward(x, conv_w, bn_gamma, bn_beta, bn_mean, bn_var)

    # default path: bf16 matmul inputs (recommended on all generations), f32 accumulation
    out = hybrid_net_block(x, conv_w, bn_gamma, bn_beta, bn_mean, bn_var)
    out = jax.block_until_ready(out)
    assert out.shape == (N, Cout, 6, 6), out.shape
    np.testing.assert_allclose(np.asarray(out), np.asarray(ref), rtol=3e-2, atol=3e-2)

    # f32 matmul-input path (tight check)
    out_f32 = hybrid_net_block(x, conv_w, bn_gamma, bn_beta, bn_mean, bn_var,
                               compute_dtype=jnp.float32)
    out_f32 = jax.block_until_ready(out_f32)
    np.testing.assert_allclose(np.asarray(out_f32), np.asarray(ref), rtol=2e-3, atol=2e-3)

    print("KERNEL_OK")
</pallas_src>

<mosaic_0001>
module attributes {stable_mosaic.version = 11 : i64} {
  func.func @_hybrid_block_kernel(%arg0: i32, %arg1: memref<32x64xbf16, #tpu.memory_space<vmem>>, %arg2: memref<64x384xbf16, #tpu.memory_space<vmem>>, %arg3: memref<1x48xf32, #tpu.memory_space<vmem>>, %arg4: memref<2x6x48xf32, #tpu.memory_space<vmem>>, %arg5: memref<28x48xf32, #tpu.memory_space<vmem>>) attributes {dimension_semantics = [#tpu.dimension_semantics<parallel>], iteration_bounds = array<i64: 1>, scalar_prefetch = 0 : i64, scratch_operands = 1 : i64, tpu.core_type = #tpu.core_type<tc>, window_params = [{transform_indices = @transform_0, window_bounds = array<i64: 32, 64>}, {pipeline_mode = #tpu.pipeline_mode<synchronous>, transform_indices = @transform_1, window_bounds = array<i64: 64, 384>}, {pipeline_mode = #tpu.pipeline_mode<synchronous>, transform_indices = @transform_2, window_bounds = array<i64: 1, 48>}, {transform_indices = @transform_3, window_bounds = array<i64: 2, 6, 48>}]} {
    %c0 = arith.constant 0 : index
    %c0_0 = arith.constant 0 : index
    %0 = vector.load %arg1[%c0, %c0_0] : memref<32x64xbf16, #tpu.memory_space<vmem>>, vector<32x64xbf16>
    %c0_1 = arith.constant 0 : index
    %c0_2 = arith.constant 0 : index
    %1 = vector.load %arg2[%c0_1, %c0_2] : memref<64x384xbf16, #tpu.memory_space<vmem>>, vector<64x384xbf16>
    %cst = arith.constant dense<0.000000e+00> : vector<32x384xf32>
    %2 = tpu.matmul %0, %1, %cst {dimension_numbers = #tpu.dot_dimension_numbers<[1], [0], [0], [1], [0, 0, 1, 1], [], []>} : vector<32x64xbf16>, vector<64x384xbf16>, vector<32x384xf32> -> vector<32x384xf32>
    %3 = vector.extract_strided_slice %2 {offsets = [0, 0], sizes = [30, 112], strides = [1, 1]} : vector<32x384xf32> to vector<30x112xf32>
    %4 = vector.extract_strided_slice %2 {offsets = [1, 128], sizes = [30, 112], strides = [1, 1]} : vector<32x384xf32> to vector<30x112xf32>
    %5 = arith.addf %3, %4 : vector<30x112xf32>
    %6 = vector.extract_strided_slice %2 {offsets = [2, 256], sizes = [30, 112], strides = [1, 1]} : vector<32x384xf32> to vector<30x112xf32>
    %7 = arith.addf %5, %6 : vector<30x112xf32>
    %8 = vector.extract_strided_slice %7 {offsets = [0, 0], sizes = [28, 112], strides = [1, 1]} : vector<30x112xf32> to vector<28x112xf32>
    %9 = vector.extract_strided_slice %7 {offsets = [1, 0], sizes = [28, 112], strides = [1, 1]} : vector<30x112xf32> to vector<28x112xf32>
    %10 = arith.maximumf %8, %9 : vector<28x112xf32>
    %11 = vector.extract_strided_slice %7 {offsets = [2, 0], sizes = [28, 112], strides = [1, 1]} : vector<30x112xf32> to vector<28x112xf32>
    %12 = arith.maximumf %10, %11 : vector<28x112xf32>
    %13 = vector.extract_strided_slice %12 {offsets = [0, 0], sizes = [28, 48], strides = [1, 1]} : vector<28x112xf32> to vector<28x48xf32>
    %14 = vector.extract_strided_slice %12 {offsets = [0, 8], sizes = [28, 48], strides = [1, 1]} : vector<28x112xf32> to vector<28x48xf32>
    %15 = vector.extract_strided_slice %12 {offsets = [0, 56], sizes = [28, 48], strides = [1, 1]} : vector<28x112xf32> to vector<28x48xf32>
    %16 = arith.maximumf %13, %14 : vector<28x48xf32>
    %17 = arith.maximumf %16, %15 : vector<28x48xf32>
    %c0_3 = arith.constant 0 : index
    %c0_4 = arith.constant 0 : index
    %18 = vector.load %arg5[%c0_3, %c0_4] : memref<28x48xf32, #tpu.memory_space<vmem>>, vector<28x48xf32>
    tpu.vector_store %arg5[%c0_3, %c0_4], %17 {strides = array<i32>} : memref<28x48xf32, #tpu.memory_space<vmem>>, vector<28x48xf32>,
    %c0_5 = arith.constant 0 : index
    %c0_6 = arith.constant 0 : index
    %19 = tpu.strided_load %arg5[%c0_5, %c0_6] {strides = array<i32: 2, 1>} : memref<28x48xf32, #tpu.memory_space<vmem>>, vector<6x48xf32>
    %c0_7 = arith.constant 0 : index
    %c0_8 = arith.constant 0 : index
    %20 = vector.load %arg3[%c0_7, %c0_8] : memref<1x48xf32, #tpu.memory_space<vmem>>, vector<1x48xf32>
    %21 = vector.broadcast %20 : vector<1x48xf32> to vector<6x48xf32>
    %22 = arith.addf %19, %21 : vector<6x48xf32>
    %cst_9 = arith.constant 0.000000e+00 : f32
    %23 = vector.broadcast %cst_9 : f32 to vector<6x48xf32>
    %24 = arith.maximumf %22, %23 : vector<6x48xf32>
    %c0_10 = arith.constant 0 : index
    %c0_11 = arith.constant 0 : index
    %c0_12 = arith.constant 0 : index
    %25 = vector.load %arg4[%c0_10, %c0_11, %c0_12] : memref<2x6x48xf32, #tpu.memory_space<vmem>>, vector<1x6x48xf32>
    %26 = vector.shape_cast %25 : vector<1x6x48xf32> to vector<6x48xf32>
    %27 = vector.shape_cast %24 : vector<6x48xf32> to vector<1x6x48xf32>
    tpu.vector_store %arg4[%c0_10, %c0_11, %c0_12], %27 {strides = array<i32>} : memref<2x6x48xf32, #tpu.memory_space<vmem>>, vector<1x6x48xf32>,
    %c16 = arith.constant 16 : index
    %c0_13 = arith.constant 0 : index
    %28 = tpu.strided_load %arg5[%c16, %c0_13] {strides = array<i32: 2, 1>} : memref<28x48xf32, #tpu.memory_space<vmem>>, vector<6x48xf32>
    %c0_14 = arith.constant 0 : index
    %c0_15 = arith.constant 0 : index
    %29 = vector.load %arg3[%c0_14, %c0_15] : memref<1x48xf32, #tpu.memory_space<vmem>>, vector<1x48xf32>
    %30 = vector.broadcast %29 : vector<1x48xf32> to vector<6x48xf32>
    %31 = arith.addf %28, %30 : vector<6x48xf32>
    %cst_16 = arith.constant 0.000000e+00 : f32
    %32 = vector.broadcast %cst_16 : f32 to vector<6x48xf32>
    %33 = arith.maximumf %31, %32 : vector<6x48xf32>
    %c1 = arith.constant 1 : index
    %c0_17 = arith.constant 0 : index
    %c0_18 = arith.constant 0 : index
    %34 = vector.load %arg4[%c1, %c0_17, %c0_18] : memref<2x6x48xf32, #tpu.memory_space<vmem>>, vector<1x6x48xf32>
    %35 = vector.shape_cast %34 : vector<1x6x48xf32> to vector<6x48xf32>
    %36 = vector.shape_cast %33 : vector<6x48xf32> to vector<1x6x48xf32>
    tpu.vector_store %arg4[%c1, %c0_17, %c0_18], %36 {strides = array<i32>} : memref<2x6x48xf32, #tpu.memory_space<vmem>>, vector<1x6x48xf32>,
    return
  }
  func.func @transform_0(%arg0: i32) -> (i32, i32) {
    %c0_i32 = arith.constant 0 : i32
    %c0_i32_0 = arith.constant 0 : i32
    return %arg0, %c0_i32 : i32, i32
  }
  func.func @transform_1(%arg0: i32) -> (i32, i32) {
    %c0_i32 = arith.constant 0 : i32
    %c0_i32_0 = arith.constant 0 : i32
    %c0_i32_1 = arith.constant 0 : i32
    return %c0_i32, %c0_i32_0 : i32, i32
  }
  func.func @transform_2(%arg0: i32) -> (i32, i32) {
    %c0_i32 = arith.constant 0 : i32
    %c0_i32_0 = arith.constant 0 : i32
    %c0_i32_1 = arith.constant 0 : i32
    return %c0_i32, %c0_i32_0 : i32, i32
  }
  func.func @transform_3(%arg0: i32) -> (i32, i32, i32) {
    %c0_i32 = arith.constant 0 : i32
    %c0_i32_0 = arith.constant 0 : i32
    %c0_i32_1 = arith.constant 0 : i32
    return %arg0, %c0_i32, %c0_i32_0 : i32, i32, i32
  }
}

module attributes {stable_mosaic.version = 11 : i64} {
  func.func @_hybrid_block_kernel(%arg0: i32, %arg1: memref<32x64xbf16, #tpu.memory_space<vmem>>, %arg2: memref<64x384xbf16, #tpu.memory_space<vmem>>, %arg3: memref<1x48xf32, #tpu.memory_space<vmem>>, %arg4: memref<2x6x48xf32, #tpu.memory_space<vmem>>, %arg5: memref<28x48xf32, #tpu.memory_space<vmem>>) attributes {dimension_semantics = [#tpu.dimension_semantics<parallel>], iteration_bounds = array<i64: 1>, scalar_prefetch = 0 : i64, scratch_operands = 1 : i64, tpu.core_type = #tpu.core_type<tc>, window_params = [{transform_indices = @transform_0, window_bounds = array<i64: 32, 64>}, {pipeline_mode = #tpu.pipeline_mode<synchronous>, transform_indices = @transform_1, window_bounds = array<i64: 64, 384>}, {pipeline_mode = #tpu.pipeline_mode<synchronous>, transform_indices = @transform_2, window_bounds = array<i64: 1, 48>}, {transform_indices = @transform_3, window_bounds = array<i64: 2, 6, 48>}]} {
    %c0 = arith.constant 0 : index
    %c0_0 = arith.constant 0 : index
    %0 = vector.load %arg1[%c0, %c0_0] : memref<32x64xbf16, #tpu.memory_space<vmem>>, vector<32x64xbf16>
    %c0_1 = arith.constant 0 : index
    %c0_2 = arith.constant 0 : index
    %1 = vector.load %arg2[%c0_1, %c0_2] : memref<64x384xbf16, #tpu.memory_space<vmem>>, vector<64x384xbf16>
    %cst = arith.constant dense<0.000000e+00> : vector<32x384xf32>
    %2 = tpu.matmul %0, %1, %cst {dimension_numbers = #tpu.dot_dimension_numbers<[1], [0], [0], [1], [0, 0, 1, 1], [], []>} : vector<32x64xbf16>, vector<64x384xbf16>, vector<32x384xf32> -> vector<32x384xf32>
    %3 = vector.extract_strided_slice %2 {offsets = [0, 0], sizes = [30, 112], strides = [1, 1]} : vector<32x384xf32> to vector<30x112xf32>
    %4 = vector.extract_strided_slice %2 {offsets = [1, 128], sizes = [30, 112], strides = [1, 1]} : vector<32x384xf32> to vector<30x112xf32>
    %5 = arith.addf %3, %4 : vector<30x112xf32>
    %6 = vector.extract_strided_slice %2 {offsets = [2, 256], sizes = [30, 112], strides = [1, 1]} : vector<32x384xf32> to vector<30x112xf32>
    %7 = arith.addf %5, %6 : vector<30x112xf32>
    %8 = vector.extract_strided_slice %7 {offsets = [0, 0], sizes = [28, 112], strides = [1, 1]} : vector<30x112xf32> to vector<28x112xf32>
    %9 = vector.extract_strided_slice %7 {offsets = [1, 0], sizes = [28, 112], strides = [1, 1]} : vector<30x112xf32> to vector<28x112xf32>
    %10 = arith.maximumf %8, %9 : vector<28x112xf32>
    %11 = vector.extract_strided_slice %7 {offsets = [2, 0], sizes = [28, 112], strides = [1, 1]} : vector<30x112xf32> to vector<28x112xf32>
    %12 = arith.maximumf %10, %11 : vector<28x112xf32>
    %13 = vector.extract_strided_slice %12 {offsets = [0, 0], sizes = [28, 48], strides = [1, 1]} : vector<28x112xf32> to vector<28x48xf32>
    %14 = vector.extract_strided_slice %12 {offsets = [0, 8], sizes = [28, 48], strides = [1, 1]} : vector<28x112xf32> to vector<28x48xf32>
    %15 = vector.extract_strided_slice %12 {offsets = [0, 56], sizes = [28, 48], strides = [1, 1]} : vector<28x112xf32> to vector<28x48xf32>
    %16 = arith.maximumf %13, %14 : vector<28x48xf32>
    %17 = arith.maximumf %16, %15 : vector<28x48xf32>
    %c0_3 = arith.constant 0 : index
    %c0_4 = arith.constant 0 : index
    %18 = vector.load %arg5[%c0_3, %c0_4] : memref<28x48xf32, #tpu.memory_space<vmem>>, vector<28x48xf32>
    tpu.vector_store %arg5[%c0_3, %c0_4], %17 {strides = array<i32>} : memref<28x48xf32, #tpu.memory_space<vmem>>, vector<28x48xf32>,
    %c0_5 = arith.constant 0 : index
    %c0_6 = arith.constant 0 : index
    %19 = tpu.strided_load %arg5[%c0_5, %c0_6] {strides = array<i32: 2, 1>} : memref<28x48xf32, #tpu.memory_space<vmem>>, vector<6x48xf32>
    %c0_7 = arith.constant 0 : index
    %c0_8 = arith.constant 0 : index
    %20 = vector.load %arg3[%c0_7, %c0_8] : memref<1x48xf32, #tpu.memory_space<vmem>>, vector<1x48xf32>
    %21 = vector.broadcast %20 : vector<1x48xf32> to vector<6x48xf32>
    %22 = arith.addf %19, %21 : vector<6x48xf32>
    %cst_9 = arith.constant 0.000000e+00 : f32
    %23 = vector.broadcast %cst_9 : f32 to vector<6x48xf32>
    %24 = arith.maximumf %22, %23 : vector<6x48xf32>
    %c0_10 = arith.constant 0 : index
    %c0_11 = arith.constant 0 : index
    %c0_12 = arith.constant 0 : index
    %25 = vector.load %arg4[%c0_10, %c0_11, %c0_12] : memref<2x6x48xf32, #tpu.memory_space<vmem>>, vector<1x6x48xf32>
    %26 = vector.shape_cast %25 : vector<1x6x48xf32> to vector<6x48xf32>
    %27 = vector.shape_cast %24 : vector<6x48xf32> to vector<1x6x48xf32>
    tpu.vector_store %arg4[%c0_10, %c0_11, %c0_12], %27 {strides = array<i32>} : memref<2x6x48xf32, #tpu.memory_space<vmem>>, vector<1x6x48xf32>,
    %c16 = arith.constant 16 : index
    %c0_13 = arith.constant 0 : index
    %28 = tpu.strided_load %arg5[%c16, %c0_13] {strides = array<i32: 2, 1>} : memref<28x48xf32, #tpu.memory_space<vmem>>, vector<6x48xf32>
    %c0_14 = arith.constant 0 : index
    %c0_15 = arith.constant 0 : index
    %29 = vector.load %arg3[%c0_14, %c0_15] : memref<1x48xf32, #tpu.memory_space<vmem>>, vector<1x48xf32>
    %30 = vector.broadcast %29 : vector<1x48xf32> to vector<6x48xf32>
    %31 = arith.addf %28, %30 : vector<6x48xf32>
    %cst_16 = arith.constant 0.000000e+00 : f32
    %32 = vector.broadcast %cst_16 : f32 to vector<6x48xf32>
    %33 = arith.maximumf %31, %32 : vector<6x48xf32>
    %c1 = arith.constant 1 : index
    %c0_17 = arith.constant 0 : index
    %c0_18 = arith.constant 0 : index
    %34 = vector.load %arg4[%c1, %c0_17, %c0_18] : memref<2x6x48xf32, #tpu.memory_space<vmem>>, vector<1x6x48xf32>
    %35 = vector.shape_cast %34 : vector<1x6x48xf32> to vector<6x48xf32>
    %36 = vector.shape_cast %33 : vector<6x48xf32> to vector<1x6x48xf32>
    tpu.vector_store %arg4[%c1, %c0_17, %c0_18], %36 {strides = array<i32>} : memref<2x6x48xf32, #tpu.memory_space<vmem>>, vector<1x6x48xf32>,
    return
  }
  func.func @transform_0(%arg0: i32) -> (i32, i32) {
    %c0_i32 = arith.constant 0 : i32
    %c0_i32_0 = arith.constant 0 : i32
    return %arg0, %c0_i32 : i32, i32
  }
  func.func @transform_1(%arg0: i32) -> (i32, i32) {
    %c0_i32 = arith.constant 0 : i32
    %c0_i32_0 = arith.constant 0 : i32
    %c0_i32_1 = arith.constant 0 : i32
    return %c0_i32, %c0_i32_0 : i32, i32
  }
  func.func @transform_2(%arg0: i32) -> (i32, i32) {
    %c0_i32 = arith.constant 0 : i32
    %c0_i32_0 = arith.constant 0 : i32
    %c0_i32_1 = arith.constant 0 : i32
    return %c0_i32, %c0_i32_0 : i32, i32
  }
  func.func @transform_3(%arg0: i32) -> (i32, i32, i32) {
    %c0_i32 = arith.constant 0 : i32
    %c0_i32_0 = arith.constant 0 : i32
    %c0_i32_1 = arith.constant 0 : i32
    return %arg0, %c0_i32, %c0_i32_0 : i32, i32, i32
  }
}

</mosaic_0001>

<llo_original>
// kernel: tpu_custom_call.1
$region0: #{tpu_custom_call.1}
  #allocation0 [shape = 'u32[]', space=smem, size = 0x4, offset = 0x4, fixed_abs, tag = 'smem constant byte address 0x4 - core index']
  #allocation1 [shape = 'u32[144,128]{1,0:T(1,128)}', space=vmem, size = 0x12000, scoped, tag = 'internal scratch']
  #allocation2 [shape = 'f32[28,48]{1,0:T(8,128)}', space=vmem, size = 0x4000, scoped, tag = 'scratch operand']
  %s0 = inlined_call_operand.hbm [shape: bf16[32,64], index: 0, kind: input, shape index: {}]
  %s1 = inlined_call_operand.hbm [shape: bf16[64,384], index: 1, kind: input, shape index: {}]
  %s2 = inlined_call_operand.vmem [shape: f32[1,48], index: 2, kind: input, shape index: {}]
  %s3 = inlined_call_operand.vmem [shape: f32[2,6,48], index: 3, kind: output, shape index: {}]
  %s4 = sld [smem:[#allocation0]]
  $region30: #{tpu_custom_call.1} parent=0
    _
  %s6 = ssub.s32 1, %s4
  %s7 = scalar_select 0, %s6, %s4
  $region1: #{tpu_custom_call.1} parent=0
    #allocation3 [shape = 'u8[8192]{0}', space=vmem, size = 0x2000, scoped, tag = 'input window, operand 0, single buffered']
    #allocation4 [shape = 's32[1]{0}', space=sflag, size = 0x4, scoped, tag = 'scoped memory for tpu_custom_call.1']
    #allocation5 [shape = 'u8[49152]{0}', space=vmem, size = 0xc000, scoped, tag = 'input window, operand 1, single buffered']
    #allocation6 [shape = 's32[1]{0}', space=sflag, size = 0x4, scoped, tag = 'scoped memory for tpu_custom_call.1']
    %8 = vsyncpa [#allocation4], 0
    %9 = vsyncpa [#allocation6], 0
    // Predicated region
    $region2: #{tpu_custom_call.1} parent=1 // pred_check
      _
    $region3: #{tpu_custom_call.1} parent=1 // pred_check_branch
      %11 = sbr.rel (0) target = $region5
    $region4: #{tpu_custom_call.1} parent=1 // pred_region
      %s13 = ssub.s32 256, 256
      %14 = vsyncadd [#allocation4], %s13
      %s15 = sshll.u32 [#allocation3], 4
      %s16 = int_to_ptr.vmem [resolvable:$true] %s15
      %21 = dma.hbm_to_vmem [thread:$0]  %s0, 256, %s16, [#allocation4], 64, 64, 4
    $region5: #{tpu_custom_call.1} parent=1 // pred_fallthru
      _
    // Predicated region
    $region6: #{tpu_custom_call.1} parent=1 // pred_check
      _
    $region7: #{tpu_custom_call.1} parent=1 // pred_check_branch
      %23 = sbr.rel (0) target = $region9
    $region8: #{tpu_custom_call.1} parent=1 // pred_region
      %s25 = ssub.s32 1536, 1536
      %26 = vsyncadd [#allocation6], %s25
      %s27 = sshll.u32 [#allocation5], 4
      %s28 = int_to_ptr.vmem [resolvable:$true] %s27
      %33 = dma.hbm_to_vmem [thread:$0]  %s1, 1536, %s28, [#allocation6], 192, 192, 12
    $region9: #{tpu_custom_call.1} parent=1 // pred_fallthru
      _
    // Predicated region
    $region10: #{tpu_custom_call.1} parent=1 // pred_check
      _
    $region11: #{tpu_custom_call.1} parent=1 // pred_check_branch
      %35 = sbr.rel (0) target = $region13
    $region12: #{tpu_custom_call.1} parent=1 // pred_region
      _
    $region13: #{tpu_custom_call.1} parent=1 // pred_fallthru
      _
    // Predicated region
    $region14: #{tpu_custom_call.1} parent=1 // pred_check
      _
    $region15: #{tpu_custom_call.1} parent=1 // pred_check_branch
      %37 = sbr.rel (0) target = $region17
    $region16: #{tpu_custom_call.1} parent=1 // pred_region
      %38 = dma.done [#allocation4], 256
    $region17: #{tpu_custom_call.1} parent=1 // pred_fallthru
      _
    // Predicated region
    $region18: #{tpu_custom_call.1} parent=1 // pred_check
      _
    $region19: #{tpu_custom_call.1} parent=1 // pred_check_branch
      %40 = sbr.rel (0) target = $region21
    $region20: #{tpu_custom_call.1} parent=1 // pred_region
      %41 = dma.done [#allocation6], 1536
    $region21: #{tpu_custom_call.1} parent=1 // pred_fallthru
      _
    %v43 = vld [vmem:[#allocation3] sm:$0xf]
    %v44 = vld [vmem:[#allocation3 + $0x4] sm:$0xf]
    %v45 = vld [vmem:[#allocation3 + $0x8] sm:$0xf]
    %v46 = vld [vmem:[#allocation3 + $0xc] sm:$0xf]
    %v47 = vld [vmem:[#allocation5] sm:$0xff]
    %v48 = vld [vmem:[#allocation5 + $0x8] sm:$0xf]
    %v49 = vld [vmem:[#allocation5 + $0xc] sm:$0xff]
    %v50 = vld [vmem:[#allocation5 + $0x14] sm:$0xf]
    %v51 = vld [vmem:[#allocation5 + $0x18] sm:$0xff]
    %v52 = vld [vmem:[#allocation5 + $0x20] sm:$0xf]
    %v53 = vld [vmem:[#allocation5 + $0x24] sm:$0xff]
    %v54 = vld [vmem:[#allocation5 + $0x2c] sm:$0xf]
    %v55 = vld [vmem:[#allocation5 + $0x30] sm:$0xff]
    %v56 = vld [vmem:[#allocation5 + $0x38] sm:$0xf]
    %v57 = vld [vmem:[#allocation5 + $0x3c] sm:$0xff]
    %v58 = vld [vmem:[#allocation5 + $0x44] sm:$0xf]
    %v59 = vld [vmem:[#allocation5 + $0x48] sm:$0xff]
    %v60 = vld [vmem:[#allocation5 + $0x50] sm:$0xf]
    %v61 = vld [vmem:[#allocation5 + $0x54] sm:$0xff]
    %v62 = vld [vmem:[#allocation5 + $0x5c] sm:$0xf]
    %v67 = vunpack.c.l.b16 %v43
    %v68 = vunpack.c.l.b16 %v44
    %v69 = vunpack.c.l.b16 %v45
    %v70 = vunpack.c.l.b16 %v46
    %v71 = vpack.c.b16 %v68, %v67
    %v72 = vpack.c.b16 %v70, %v69
    %v89 = vunpack.c.l.b16 %v47
    %v90 = vunpack.c.h.b16 %v47
    %v91 = vunpack.c.l.b16 %v48
    %v92 = vunpack.c.l.b16 %v49
    %v93 = vunpack.c.h.b16 %v49
    %v94 = vunpack.c.l.b16 %v50
    %v95 = vunpack.c.l.b16 %v51
    %v96 = vunpack.c.h.b16 %v51
    %v97 = vunpack.c.l.b16 %v52
    %v98 = vunpack.c.l.b16 %v53
    %v99 = vunpack.c.h.b16 %v53
    %v100 = vunpack.c.l.b16 %v54
    %v101 = vunpack.c.l.b16 %v55
    %v102 = vunpack.c.h.b16 %v55
    %v103 = vunpack.c.l.b16 %v56
    %v104 = vunpack.c.l.b16 %v57
    %v105 = vunpack.c.h.b16 %v57
    %v106 = vunpack.c.l.b16 %v58
    %v107 = vunpack.c.l.b16 %v59
    %v108 = vunpack.c.h.b16 %v59
    %v109 = vunpack.c.l.b16 %v60
    %v110 = vunpack.c.l.b16 %v61
    %v111 = vunpack.c.h.b16 %v61
    %v112 = vunpack.c.l.b16 %v62
    %v113 = vpack.c.b16 %v92, %v89
    %v114 = vpack.c.b16 %v93, %v90
    %v115 = vpack.c.b16 %v94, %v91
    %v116 = vpack.c.b16 %v98, %v95
    %v117 = vpack.c.b16 %v99, %v96
    %v118 = vpack.c.b16 %v100, %v97
    %v119 = vpack.c.b16 %v104, %v101
    %v120 = vpack.c.b16 %v105, %v102
    %v121 = vpack.c.b16 %v106, %v103
    %v122 = vpack.c.b16 %v110, %v107
    %v123 = vpack.c.b16 %v111, %v108
    %v124 = vpack.c.b16 %v112, %v109
    %vm137 = vcmask 523264
    %v139 = vsel %vm137, %v71, 0
    %v142 = vsel %vm137, %v72, 0
    %144 = vmatprep.subr.bf16.mxu0 0
    %145 = vmatpush1.bf16.msra.mxu0 0
    %146 = vmatprep.subr.bf16.mxu0 0
    %147 = vmatpush1.bf16.msra.mxu0 0
    %148 = vmatprep.subr.bf16.mxu0 0
    %149 = vmatpush1.bf16.msra.mxu0 0
    %150 = vmatprep.subr.bf16.mxu0 0
    %151 = vmatpush1.bf16.msra.mxu0 0
    %152 = vmatprep.subr.bf16.mxu0 %v123
    %153 = vmatpush1.bf16.msra.mxu0 %v122
    %154 = vmatprep.subr.bf16.mxu0 %v120
    %155 = vmatpush1.bf16.msra.mxu0 %v119
    %156 = vmatprep.subr.bf16.mxu0 %v117
    %157 = vmatpush1.bf16.msra.mxu0 %v116
    %158 = vmatprep.subr.bf16.mxu0 %v114
    %159 = vmatpush1.bf16.msra.mxu0 %v113
    %160 = vmatprep.subr.bf16.mxu0 0
    %161 = vmatpush2.bf16.msra.mxu0 0
    %162 = vmatprep.subr.bf16.mxu0 0
    %163 = vmatpush2.bf16.msra.mxu0 0
    %164 = vmatprep.subr.bf16.mxu0 0
    %165 = vmatpush2.bf16.msra.mxu0 0
    %166 = vmatprep.subr.bf16.mxu0 0
    %167 = vmatpush2.bf16.msra.mxu0 0
    %168 = vmatprep.subr.bf16.mxu0 0
    %169 = vmatpush2.bf16.msra.mxu0 0
    %170 = vmatprep.subr.bf16.mxu0 0
    %171 = vmatpush2.bf16.msra.mxu0 0
    %172 = vmatprep.subr.bf16.mxu0 0
    %173 = vmatpush2.bf16.msra.mxu0 0
    %174 = vmatprep.subr.bf16.mxu0 0
    %175 = vmatpush2.bf16.msra.mxu0 0
    %176 = vmatprep.mubr.bf16.mxu0 0
    %177 = vmatmul.mubr.bf16.gmra.mxu0 %v139
    %v178 = vpop.f32.mrf.mxu0
    %v179 = vadd.f32 0.0, %v178
    %v180 = vpop.f32.mrf.mxu0
    %v181 = vadd.f32 0.0, %v180
    %v182 = vpop.f32.mrf.mxu0
    %v183 = vadd.f32 0.0, %v182
    %v184 = vpop.f32.mrf.mxu0
    %v185 = vadd.f32 0.0, %v184
    %186 = vmatprep.mubr.bf16.mxu0 0
    %187 = vmatmul.mubr.bf16.gmra.mxu0 %v142
    %v188 = vpop.f32.mrf.mxu0
    %v189 = vadd.f32 0.0, %v188
    %v190 = vpop.f32.mrf.mxu0
    %v191 = vadd.f32 0.0, %v190
    %v192 = vpop.f32.mrf.mxu0
    %v193 = vadd.f32 0.0, %v192
    %v194 = vpop.f32.mrf.mxu0
    %v195 = vadd.f32 0.0, %v194
    %196 = vdwg.mxu0
    %197 = vmatprep.subr.bf16.mxu0 0
    %198 = vmatpush1.bf16.msra.mxu0 0
    %199 = vmatprep.subr.bf16.mxu0 0
    %200 = vmatpush1.bf16.msra.mxu0 0
    %201 = vmatprep.subr.bf16.mxu0 0
    %202 = vmatpush1.bf16.msra.mxu0 0
    %203 = vmatprep.subr.bf16.mxu0 0
    %204 = vmatpush1.bf16.msra.mxu0 0
    %205 = vmatprep.subr.bf16.mxu0 0
    %206 = vmatpush1.bf16.msra.mxu0 %v124
    %207 = vmatprep.subr.bf16.mxu0 0
    %208 = vmatpush1.bf16.msra.mxu0 %v121
    %209 = vmatprep.subr.bf16.mxu0 0
    %210 = vmatpush1.bf16.msra.mxu0 %v118
    %211 = vmatprep.subr.bf16.mxu0 0
    %212 = vmatpush1.bf16.msra.mxu0 %v115
    %213 = vmatprep.subr.bf16.mxu0 0
    %214 = vmatpush2.bf16.msra.mxu0 0
    %215 = vmatprep.subr.bf16.mxu0 0
    %216 = vmatpush2.bf16.msra.mxu0 0
    %217 = vmatprep.subr.bf16.mxu0 0
    %218 = vmatpush2.bf16.msra.mxu0 0
    %219 = vmatprep.subr.bf16.mxu0 0
    %220 = vmatpush2.bf16.msra.mxu0 0
    %221 = vmatprep.subr.bf16.mxu0 0
    %222 = vmatpush2.bf16.msra.mxu0 0
    %223 = vmatprep.subr.bf16.mxu0 0
    %224 = vmatpush2.bf16.msra.mxu0 0
    %225 = vmatprep.subr.bf16.mxu0 0
    %226 = vmatpush2.bf16.msra.mxu0 0
    %227 = vmatprep.subr.bf16.mxu0 0
    %228 = vmatpush2.bf16.msra.mxu0 0
    %229 = vmatprep.mubr.bf16.mxu0 0
    %230 = vmatmul.mubr.bf16.gmra.mxu0 %v139
    %v231 = vpop.f32.mrf.mxu0
    %v232 = vadd.f32 0.0, %v231
    %v233 = vpop.f32.mrf.mxu0
    %v234 = vpop.f32.mrf.mxu0
    %v235 = vadd.f32 0.0, %v234
    %v236 = vpop.f32.mrf.mxu0
    %237 = vmatprep.mubr.bf16.mxu0 0
    %238 = vmatmul.mubr.bf16.gmra.mxu0 %v142
    %v239 = vpop.f32.mrf.mxu0
    %v240 = vadd.f32 0.0, %v239
    %v241 = vpop.f32.mrf.mxu0
    %v242 = vpop.f32.mrf.mxu0
    %v243 = vadd.f32 0.0, %v242
    %v244 = vpop.f32.mrf.mxu0
    %245 = vdwg.mxu0
    %vm250 = vcmask 1046528
    %v251 = vrot.slane %v181, 1
    %v252 = vrot.slane %v185, 1
    %v253 = vsel %vm250, %v251, %v252
    %v254 = vrot.slane %v191, 1
    %v255 = vsel %vm250, %v252, %v254
    %v256 = vrot.slane %v195, 1
    %v257 = vsel %vm250, %v254, %v256
    %v262 = vadd.f32 %v179, %v253
    %v263 = vadd.f32 %v183, %v255
    %v264 = vadd.f32 %v189, %v257
    %v265 = vadd.f32 %v193, %v256
    %vm270 = vcmask 1045504
    %v271 = vrot.slane %v232, 2
    %v272 = vrot.slane %v235, 2
    %v273 = vsel %vm270, %v271, %v272
    %v274 = vrot.slane %v240, 2
    %v275 = vsel %vm270, %v272, %v274
    %v276 = vrot.slane %v243, 2
    %v277 = vsel %vm270, %v274, %v276
    %v282 = vadd.f32 %v262, %v273
    %v283 = vadd.f32 %v263, %v275
    %v284 = vadd.f32 %v264, %v277
    %v285 = vadd.f32 %v265, %v276
    %v290 = vrot.slane %v282, 1
    %v291 = vrot.slane %v283, 1
    %v292 = vsel %vm250, %v290, %v291
    %v293 = vrot.slane %v284, 1
    %v294 = vsel %vm250, %v291, %v293
    %v295 = vrot.slane %v285, 1
    %v296 = vsel %vm250, %v293, %v295
    %v301 = vmax.f32 %v282, %v292
    %v302 = vmax.f32 %v283, %v294
    %v303 = vmax.f32 %v284, %v296
    %v304 = vmax.f32 %v285, %v295
    %v305 = vrot.slane %v282, 2
    %v306 = vrot.slane %v283, 2
    %v307 = vsel %vm270, %v305, %v306
    %v308 = vrot.slane %v284, 2
    %v309 = vsel %vm270, %v306, %v308
    %v310 = vrot.slane %v285, 2
    %v311 = vsel %vm270, %v308, %v310
    %v316 = vmax.f32 %v301, %v307
    %v317 = vmax.f32 %v302, %v309
    %v318 = vmax.f32 %v303, %v311
    %v319 = vmax.f32 %v304, %v310
    %324 = vrot.lane.b32.xlu0 %v316, 120
    %v325 = vpop.permute.xlu0 %324
    %326 = vrot.lane.b32.xlu0 %v317, 120
    %v327 = vpop.permute.xlu0 %326
    %328 = vrot.lane.b32.xlu0 %v318, 120
    %v329 = vpop.permute.xlu0 %328
    %330 = vrot.lane.b32.xlu0 %v319, 120
    %v331 = vpop.permute.xlu0 %330
    %v336 = vmax.f32 %v316, %v325
    %v337 = vmax.f32 %v317, %v327
    %v338 = vmax.f32 %v318, %v329
    %v339 = vmax.f32 %v319, %v331
    %340 = vrot.lane.b32.xlu0 %v316, 72
    %v341 = vpop.permute.xlu0 %340
    %342 = vrot.lane.b32.xlu0 %v317, 72
    %v343 = vpop.permute.xlu0 %342
    %344 = vrot.lane.b32.xlu0 %v318, 72
    %v345 = vpop.permute.xlu0 %344
    %346 = vrot.lane.b32.xlu0 %v319, 72
    %v347 = vpop.permute.xlu0 %346
    %v352 = vmax.f32 %v336, %v341
    %v353 = vmax.f32 %v337, %v343
    %v354 = vmax.f32 %v338, %v345
    %v355 = vmax.f32 %v339, %v347
    %vm356 = vcmask 392192
    %357 = vst.msk [vmem:[#allocation2] sm:$0xff] %vm356, %v352
    %358 = vst.msk [vmem:[#allocation2 + $0x8] sm:$0xff] %vm356, %v353
    %359 = vst.msk [vmem:[#allocation2 + $0x10] sm:$0xff] %vm356, %v354
    %vm360 = vcmask 388096
    %361 = vst.msk [vmem:[#allocation2 + $0x18] sm:$0xf] %vm360, %v355
    %v362 = vld [vmem:[#allocation2] ss:$2 sm:$0x3f]
    %v363 = vld [vmem:[%s2] sm:$0x1]
    %v365 = vlaneseq
    %v366 = vshrl.u32 %v365, 7
    %v367 = vsub.s32 0, %v366
    %v368 = vrot.slane %v363, %v367
    %v370 = vadd.f32 %v362, %v368
    %v371 = vmax.f32 %v370, 0.0
    %vm372 = vcmask 390144
    %373 = vst.msk [vmem:[%s3] sm:$0x3f] %vm372, %v371
    %s374 = scalar_lea.vmem [#allocation2], 16
    %v375 = vld [vmem:[%s374] ss:$2 sm:$0x3f]
    %v376 = vld [vmem:[%s2] sm:$0x1]
    %v378 = vlaneseq
    %v379 = vshrl.u32 %v378, 7
    %v380 = vsub.s32 0, %v379
    %v381 = vrot.slane %v376, %v380
    %v383 = vadd.f32 %v375, %v381
    %v384 = vmax.f32 %v383, 0.0
    %s385 = scalar_lea.vmem %s3, 8
    %386 = vst.msk [vmem:[%s385] sm:$0x3f] %vm372, %v384
    // Predicated region
    $region22: #{tpu_custom_call.1} parent=1 // pred_check
      _
    $region23: #{tpu_custom_call.1} parent=1 // pred_check_branch
      %388 = sbr.rel (0) target = $region25
    $region24: #{tpu_custom_call.1} parent=1 // pred_region
      _
    $region25: #{tpu_custom_call.1} parent=1 // pred_fallthru
      _
    // Predicated region
    $region26: #{tpu_custom_call.1} parent=1 // pred_check
      _
    $region27: #{tpu_custom_call.1} parent=1 // pred_check_branch
      %390 = sbr.rel (0) target = $region29
    $region28: #{tpu_custom_call.1} parent=1 // pred_region
      _
    $region29: #{tpu_custom_call.1} parent=1 // pred_fallthru
      _
    %391 = vsyncpa [#allocation4], 1
    %392 = vsyncpa [#allocation6], 1

// kernel: tpu_custom_call.1
$region0: #{tpu_custom_call.1}
  #allocation0 [shape = 'u32[]', space=smem, size = 0x4, offset = 0x4, fixed_abs, tag = 'smem constant byte address 0x4 - core index']
  #allocation1 [shape = 'u32[144,128]{1,0:T(1,128)}', space=vmem, size = 0x12000, scoped, tag = 'internal scratch']
  #allocation2 [shape = 'f32[28,48]{1,0:T(8,128)}', space=vmem, size = 0x4000, scoped, tag = 'scratch operand']
  %s0 = inlined_call_operand.hbm [shape: bf16[32,64], index: 0, kind: input, shape index: {}]
  %s1 = inlined_call_operand.hbm [shape: bf16[64,384], index: 1, kind: input, shape index: {}]
  %s2 = inlined_call_operand.vmem [shape: f32[1,48], index: 2, kind: input, shape index: {}]
  %s3 = inlined_call_operand.vmem [shape: f32[2,6,48], index: 3, kind: output, shape index: {}]
  %s4 = sld [smem:[#allocation0]]
  $region30: #{tpu_custom_call.1} parent=0
    _
  %s6 = ssub.s32 1, %s4
  %s7 = scalar_select 0, %s6, %s4
  $region1: #{tpu_custom_call.1} parent=0
    #allocation3 [shape = 'u8[8192]{0}', space=vmem, size = 0x2000, scoped, tag = 'input window, operand 0, single buffered']
    #allocation4 [shape = 's32[1]{0}', space=sflag, size = 0x4, scoped, tag = 'scoped memory for tpu_custom_call.1']
    #allocation5 [shape = 'u8[49152]{0}', space=vmem, size = 0xc000, scoped, tag = 'input window, operand 1, single buffered']
    #allocation6 [shape = 's32[1]{0}', space=sflag, size = 0x4, scoped, tag = 'scoped memory for tpu_custom_call.1']
    %8 = vsyncpa [#allocation4], 0
    %9 = vsyncpa [#allocation6], 0
    // Predicated region
    $region2: #{tpu_custom_call.1} parent=1 // pred_check
      _
    $region3: #{tpu_custom_call.1} parent=1 // pred_check_branch
      %11 = sbr.rel (0) target = $region5
    $region4: #{tpu_custom_call.1} parent=1 // pred_region
      %s13 = ssub.s32 256, 256
      %14 = vsyncadd [#allocation4], %s13
      %s15 = sshll.u32 [#allocation3], 4
      %s16 = int_to_ptr.vmem [resolvable:$true] %s15
      %21 = dma.hbm_to_vmem [thread:$0]  %s0, 256, %s16, [#allocation4], 64, 64, 4
    $region5: #{tpu_custom_call.1} parent=1 // pred_fallthru
      _
    // Predicated region
    $region6: #{tpu_custom_call.1} parent=1 // pred_check
      _
    $region7: #{tpu_custom_call.1} parent=1 // pred_check_branch
      %23 = sbr.rel (0) target = $region9
    $region8: #{tpu_custom_call.1} parent=1 // pred_region
      %s25 = ssub.s32 1536, 1536
      %26 = vsyncadd [#allocation6], %s25
      %s27 = sshll.u32 [#allocation5], 4
      %s28 = int_to_ptr.vmem [resolvable:$true] %s27
      %33 = dma.hbm_to_vmem [thread:$0]  %s1, 1536, %s28, [#allocation6], 192, 192, 12
    $region9: #{tpu_custom_call.1} parent=1 // pred_fallthru
      _
    // Predicated region
    $region10: #{tpu_custom_call.1} parent=1 // pred_check
      _
    $region11: #{tpu_custom_call.1} parent=1 // pred_check_branch
      %35 = sbr.rel (0) target = $region13
    $region12: #{tpu_custom_call.1} parent=1 // pred_region
      _
    $region13: #{tpu_custom_call.1} parent=1 // pred_fallthru
      _
    // Predicated region
    $region14: #{tpu_custom_call.1} parent=1 // pred_check
      _
    $region15: #{tpu_custom_call.1} parent=1 // pred_check_branch
      %37 = sbr.rel (0) target = $region17
    $region16: #{tpu_custom_call.1} parent=1 // pred_region
      %38 = dma.done [#allocation4], 256
    $region17: #{tpu_custom_call.1} parent=1 // pred_fallthru
      _
    // Predicated region
    $region18: #{tpu_custom_call.1} parent=1 // pred_check
      _
    $region19: #{tpu_custom_call.1} parent=1 // pred_check_branch
      %40 = sbr.rel (0) target = $region21
    $region20: #{tpu_custom_call.1} parent=1 // pred_region
      %41 = dma.done [#allocation6], 1536
    $region21: #{tpu_custom_call.1} parent=1 // pred_fallthru
      _
    %v43 = vld [vmem:[#allocation3] sm:$0xf]
    %v44 = vld [vmem:[#allocation3 + $0x4] sm:$0xf]
    %v45 = vld [vmem:[#allocation3 + $0x8] sm:$0xf]
    %v46 = vld [vmem:[#allocation3 + $0xc] sm:$0xf]
    %v47 = vld [vmem:[#allocation5] sm:$0xff]
    %v48 = vld [vmem:[#allocation5 + $0x8] sm:$0xf]
    %v49 = vld [vmem:[#allocation5 + $0xc] sm:$0xff]
    %v50 = vld [vmem:[#allocation5 + $0x14] sm:$0xf]
    %v51 = vld [vmem:[#allocation5 + $0x18] sm:$0xff]
    %v52 = vld [vmem:[#allocation5 + $0x20] sm:$0xf]
    %v53 = vld [vmem:[#allocation5 + $0x24] sm:$0xff]
    %v54 = vld [vmem:[#allocation5 + $0x2c] sm:$0xf]
    %v55 = vld [vmem:[#allocation5 + $0x30] sm:$0xff]
    %v56 = vld [vmem:[#allocation5 + $0x38] sm:$0xf]
    %v57 = vld [vmem:[#allocation5 + $0x3c] sm:$0xff]
    %v58 = vld [vmem:[#allocation5 + $0x44] sm:$0xf]
    %v59 = vld [vmem:[#allocation5 + $0x48] sm:$0xff]
    %v60 = vld [vmem:[#allocation5 + $0x50] sm:$0xf]
    %v61 = vld [vmem:[#allocation5 + $0x54] sm:$0xff]
    %v62 = vld [vmem:[#allocation5 + $0x5c] sm:$0xf]
    %v67 = vunpack.c.l.b16 %v43
    %v68 = vunpack.c.l.b16 %v44
    %v69 = vunpack.c.l.b16 %v45
    %v70 = vunpack.c.l.b16 %v46
    %v71 = vpack.c.b16 %v68, %v67
    %v72 = vpack.c.b16 %v70, %v69
    %v89 = vunpack.c.l.b16 %v47
    %v90 = vunpack.c.h.b16 %v47
    %v91 = vunpack.c.l.b16 %v48
    %v92 = vunpack.c.l.b16 %v49
    %v93 = vunpack.c.h.b16 %v49
    %v94 = vunpack.c.l.b16 %v50
    %v95 = vunpack.c.l.b16 %v51
    %v96 = vunpack.c.h.b16 %v51
    %v97 = vunpack.c.l.b16 %v52
    %v98 = vunpack.c.l.b16 %v53
    %v99 = vunpack.c.h.b16 %v53
    %v100 = vunpack.c.l.b16 %v54
    %v101 = vunpack.c.l.b16 %v55
    %v102 = vunpack.c.h.b16 %v55
    %v103 = vunpack.c.l.b16 %v56
    %v104 = vunpack.c.l.b16 %v57
    %v105 = vunpack.c.h.b16 %v57
    %v106 = vunpack.c.l.b16 %v58
    %v107 = vunpack.c.l.b16 %v59
    %v108 = vunpack.c.h.b16 %v59
    %v109 = vunpack.c.l.b16 %v60
    %v110 = vunpack.c.l.b16 %v61
    %v111 = vunpack.c.h.b16 %v61
    %v112 = vunpack.c.l.b16 %v62
    %v113 = vpack.c.b16 %v92, %v89
    %v114 = vpack.c.b16 %v93, %v90
    %v115 = vpack.c.b16 %v94, %v91
    %v116 = vpack.c.b16 %v98, %v95
    %v117 = vpack.c.b16 %v99, %v96
    %v118 = vpack.c.b16 %v100, %v97
    %v119 = vpack.c.b16 %v104, %v101
    %v120 = vpack.c.b16 %v105, %v102
    %v121 = vpack.c.b16 %v106, %v103
    %v122 = vpack.c.b16 %v110, %v107
    %v123 = vpack.c.b16 %v111, %v108
    %v124 = vpack.c.b16 %v112, %v109
    %vm137 = vcmask 523264
    %v139 = vsel %vm137, %v71, 0
    %v142 = vsel %vm137, %v72, 0
    %144 = vmatprep.subr.bf16.mxu0 0
    %145 = vmatpush1.bf16.msra.mxu0 0
    %146 = vmatprep.subr.bf16.mxu0 0
    %147 = vmatpush1.bf16.msra.mxu0 0
    %148 = vmatprep.subr.bf16.mxu0 0
    %149 = vmatpush1.bf16.msra.mxu0 0
    %150 = vmatprep.subr.bf16.mxu0 0
    %151 = vmatpush1.bf16.msra.mxu0 0
    %152 = vmatprep.subr.bf16.mxu0 %v123
    %153 = vmatpush1.bf16.msra.mxu0 %v122
    %154 = vmatprep.subr.bf16.mxu0 %v120
    %155 = vmatpush1.bf16.msra.mxu0 %v119
    %156 = vmatprep.subr.bf16.mxu0 %v117
    %157 = vmatpush1.bf16.msra.mxu0 %v116
    %158 = vmatprep.subr.bf16.mxu0 %v114
    %159 = vmatpush1.bf16.msra.mxu0 %v113
    %160 = vmatprep.subr.bf16.mxu0 0
    %161 = vmatpush2.bf16.msra.mxu0 0
    %162 = vmatprep.subr.bf16.mxu0 0
    %163 = vmatpush2.bf16.msra.mxu0 0
    %164 = vmatprep.subr.bf16.mxu0 0
    %165 = vmatpush2.bf16.msra.mxu0 0
    %166 = vmatprep.subr.bf16.mxu0 0
    %167 = vmatpush2.bf16.msra.mxu0 0
    %168 = vmatprep.subr.bf16.mxu0 0
    %169 = vmatpush2.bf16.msra.mxu0 0
    %170 = vmatprep.subr.bf16.mxu0 0
    %171 = vmatpush2.bf16.msra.mxu0 0
    %172 = vmatprep.subr.bf16.mxu0 0
    %173 = vmatpush2.bf16.msra.mxu0 0
    %174 = vmatprep.subr.bf16.mxu0 0
    %175 = vmatpush2.bf16.msra.mxu0 0
    %176 = vmatprep.mubr.bf16.mxu0 0
    %177 = vmatmul.mubr.bf16.gmra.mxu0 %v139
    %v178 = vpop.f32.mrf.mxu0
    %v179 = vadd.f32 0.0, %v178
    %v180 = vpop.f32.mrf.mxu0
    %v181 = vadd.f32 0.0, %v180
    %v182 = vpop.f32.mrf.mxu0
    %v183 = vadd.f32 0.0, %v182
    %v184 = vpop.f32.mrf.mxu0
    %v185 = vadd.f32 0.0, %v184
    %186 = vmatprep.mubr.bf16.mxu0 0
    %187 = vmatmul.mubr.bf16.gmra.mxu0 %v142
    %v188 = vpop.f32.mrf.mxu0
    %v189 = vadd.f32 0.0, %v188
    %v190 = vpop.f32.mrf.mxu0
    %v191 = vadd.f32 0.0, %v190
    %v192 = vpop.f32.mrf.mxu0
    %v193 = vadd.f32 0.0, %v192
    %v194 = vpop.f32.mrf.mxu0
    %v195 = vadd.f32 0.0, %v194
    %196 = vdwg.mxu0
    %197 = vmatprep.subr.bf16.mxu0 0
    %198 = vmatpush1.bf16.msra.mxu0 0
    %199 = vmatprep.subr.bf16.mxu0 0
    %200 = vmatpush1.bf16.msra.mxu0 0
    %201 = vmatprep.subr.bf16.mxu0 0
    %202 = vmatpush1.bf16.msra.mxu0 0
    %203 = vmatprep.subr.bf16.mxu0 0
    %204 = vmatpush1.bf16.msra.mxu0 0
    %205 = vmatprep.subr.bf16.mxu0 0
    %206 = vmatpush1.bf16.msra.mxu0 %v124
    %207 = vmatprep.subr.bf16.mxu0 0
    %208 = vmatpush1.bf16.msra.mxu0 %v121
    %209 = vmatprep.subr.bf16.mxu0 0
    %210 = vmatpush1.bf16.msra.mxu0 %v118
    %211 = vmatprep.subr.bf16.mxu0 0
    %212 = vmatpush1.bf16.msra.mxu0 %v115
    %213 = vmatprep.subr.bf16.mxu0 0
    %214 = vmatpush2.bf16.msra.mxu0 0
    %215 = vmatprep.subr.bf16.mxu0 0
    %216 = vmatpush2.bf16.msra.mxu0 0
    %217 = vmatprep.subr.bf16.mxu0 0
    %218 = vmatpush2.bf16.msra.mxu0 0
    %219 = vmatprep.subr.bf16.mxu0 0
    %220 = vmatpush2.bf16.msra.mxu0 0
    %221 = vmatprep.subr.bf16.mxu0 0
    %222 = vmatpush2.bf16.msra.mxu0 0
    %223 = vmatprep.subr.bf16.mxu0 0
    %224 = vmatpush2.bf16.msra.mxu0 0
    %225 = vmatprep.subr.bf16.mxu0 0
    %226 = vmatpush2.bf16.msra.mxu0 0
    %227 = vmatprep.subr.bf16.mxu0 0
    %228 = vmatpush2.bf16.msra.mxu0 0
    %229 = vmatprep.mubr.bf16.mxu0 0
    %230 = vmatmul.mubr.bf16.gmra.mxu0 %v139
    %v231 = vpop.f32.mrf.mxu0
    %v232 = vadd.f32 0.0, %v231
    %v233 = vpop.f32.mrf.mxu0
    %v234 = vpop.f32.mrf.mxu0
    %v235 = vadd.f32 0.0, %v234
    %v236 = vpop.f32.mrf.mxu0
    %237 = vmatprep.mubr.bf16.mxu0 0
    %238 = vmatmul.mubr.bf16.gmra.mxu0 %v142
    %v239 = vpop.f32.mrf.mxu0
    %v240 = vadd.f32 0.0, %v239
    %v241 = vpop.f32.mrf.mxu0
    %v242 = vpop.f32.mrf.mxu0
    %v243 = vadd.f32 0.0, %v242
    %v244 = vpop.f32.mrf.mxu0
    %245 = vdwg.mxu0
    %vm250 = vcmask 1046528
    %v251 = vrot.slane %v181, 1
    %v252 = vrot.slane %v185, 1
    %v253 = vsel %vm250, %v251, %v252
    %v254 = vrot.slane %v191, 1
    %v255 = vsel %vm250, %v252, %v254
    %v256 = vrot.slane %v195, 1
    %v257 = vsel %vm250, %v254, %v256
    %v262 = vadd.f32 %v179, %v253
    %v263 = vadd.f32 %v183, %v255
    %v264 = vadd.f32 %v189, %v257
    %v265 = vadd.f32 %v193, %v256
    %vm270 = vcmask 1045504
    %v271 = vrot.slane %v232, 2
    %v272 = vrot.slane %v235, 2
    %v273 = vsel %vm270, %v271, %v272
    %v274 = vrot.slane %v240, 2
    %v275 = vsel %vm270, %v272, %v274
    %v276 = vrot.slane %v243, 2
    %v277 = vsel %vm270, %v274, %v276
    %v282 = vadd.f32 %v262, %v273
    %v283 = vadd.f32 %v263, %v275
    %v284 = vadd.f32 %v264, %v277
    %v285 = vadd.f32 %v265, %v276
    %v290 = vrot.slane %v282, 1
    %v291 = vrot.slane %v283, 1
    %v292 = vsel %vm250, %v290, %v291
    %v293 = vrot.slane %v284, 1
    %v294 = vsel %vm250, %v291, %v293
    %v295 = vrot.slane %v285, 1
    %v296 = vsel %vm250, %v293, %v295
    %v301 = vmax.f32 %v282, %v292
    %v302 = vmax.f32 %v283, %v294
    %v303 = vmax.f32 %v284, %v296
    %v304 = vmax.f32 %v285, %v295
    %v305 = vrot.slane %v282, 2
    %v306 = vrot.slane %v283, 2
    %v307 = vsel %vm270, %v305, %v306
    %v308 = vrot.slane %v284, 2
    %v309 = vsel %vm270, %v306, %v308
    %v310 = vrot.slane %v285, 2
    %v311 = vsel %vm270, %v308, %v310
    %v316 = vmax.f32 %v301, %v307
    %v317 = vmax.f32 %v302, %v309
    %v318 = vmax.f32 %v303, %v311
    %v319 = vmax.f32 %v304, %v310
    %324 = vrot.lane.b32.xlu0 %v316, 120
    %v325 = vpop.permute.xlu0 %324
    %326 = vrot.lane.b32.xlu0 %v317, 120
    %v327 = vpop.permute.xlu0 %326
    %328 = vrot.lane.b32.xlu0 %v318, 120
    %v329 = vpop.permute.xlu0 %328
    %330 = vrot.lane.b32.xlu0 %v319, 120
    %v331 = vpop.permute.xlu0 %330
    %v336 = vmax.f32 %v316, %v325
    %v337 = vmax.f32 %v317, %v327
    %v338 = vmax.f32 %v318, %v329
    %v339 = vmax.f32 %v319, %v331
    %340 = vrot.lane.b32.xlu0 %v316, 72
    %v341 = vpop.permute.xlu0 %340
    %342 = vrot.lane.b32.xlu0 %v317, 72
    %v343 = vpop.permute.xlu0 %342
    %344 = vrot.lane.b32.xlu0 %v318, 72
    %v345 = vpop.permute.xlu0 %344
    %346 = vrot.lane.b32.xlu0 %v319, 72
    %v347 = vpop.permute.xlu0 %346
    %v352 = vmax.f32 %v336, %v341
    %v353 = vmax.f32 %v337, %v343
    %v354 = vmax.f32 %v338, %v345
    %v355 = vmax.f32 %v339, %v347
    %vm356 = vcmask 392192
    %357 = vst.msk [vmem:[#allocation2] sm:$0xff] %vm356, %v352
    %358 = vst.msk [vmem:[#allocation2 + $0x8] sm:$0xff] %vm356, %v353
    %359 = vst.msk [vmem:[#allocation2 + $0x10] sm:$0xff] %vm356, %v354
    %vm360 = vcmask 388096
    %361 = vst.msk [vmem:[#allocation2 + $0x18] sm:$0xf] %vm360, %v355
    %v362 = vld [vmem:[#allocation2] ss:$2 sm:$0x3f]
    %v363 = vld [vmem:[%s2] sm:$0x1]
    %v365 = vlaneseq
    %v366 = vshrl.u32 %v365, 7
    %v367 = vsub.s32 0, %v366
    %v368 = vrot.slane %v363, %v367
    %v370 = vadd.f32 %v362, %v368
    %v371 = vmax.f32 %v370, 0.0
    %vm372 = vcmask 390144
    %373 = vst.msk [vmem:[%s3] sm:$0x3f] %vm372, %v371
    %s374 = scalar_lea.vmem [#allocation2], 16
    %v375 = vld [vmem:[%s374] ss:$2 sm:$0x3f]
    %v376 = vld [vmem:[%s2] sm:$0x1]
    %v378 = vlaneseq
    %v379 = vshrl.u32 %v378, 7
    %v380 = vsub.s32 0, %v379
    %v381 = vrot.slane %v376, %v380
    %v383 = vadd.f32 %v375, %v381
    %v384 = vmax.f32 %v383, 0.0
    %s385 = scalar_lea.vmem %s3, 8
    %386 = vst.msk [vmem:[%s385] sm:$0x3f] %vm372, %v384
    // Predicated region
    $region22: #{tpu_custom_call.1} parent=1 // pred_check
      _
    $region23: #{tpu_custom_call.1} parent=1 // pred_check_branch
      %388 = sbr.rel (0) target = $region25
    $region24: #{tpu_custom_call.1} parent=1 // pred_region
      _
    $region25: #{tpu_custom_call.1} parent=1 // pred_fallthru
      _
    // Predicated region
    $region26: #{tpu_custom_call.1} parent=1 // pred_check
      _
    $region27: #{tpu_custom_call.1} parent=1 // pred_check_branch
      %390 = sbr.rel (0) target = $region29
    $region28: #{tpu_custom_call.1} parent=1 // pred_region
      _
    $region29: #{tpu_custom_call.1} parent=1 // pred_fallthru
      _
    %391 = vsyncpa [#allocation4], 1
    %392 = vsyncpa [#allocation6], 1

</llo_original>
